<compile_context>
chip_gen: v5e
topology: v5e:2x2
jax: 0.10.0
libtpu: 0.0.40
codegen_flags: <defaults>
</compile_context>

<pallas_src>
import jax
import jax.numpy as jnp
from jax.experimental import pallas as pl
from jax.experimental.pallas import tpu as pltpu


def _round_up(x, m):
    return int(pl.cdiv(x, m) * m)


def _fusion_kernel(x_ref, w1_ref, b1_ref, w2_ref, b2_ref, y_ref, acc_ref):
    # x_ref:   (tm, Din)        bf16 (constant across the Dff axis)
    # w1_ref:  (Din, tf)        bf16      b1_ref: (1, tf)        f32
    # w2_ref:  (tf, Dout_pad)   bf16      b2_ref: (1, Dout_pad)  f32
    # y_ref:   (tm, Dout_pad)   output dtype
    # acc_ref: (tm, Dout_pad)   f32 scratch, resident across the Dff axis
    f = pl.program_id(1)

    @pl.when(f == 0)
    def _init():
        acc_ref[...] = jnp.zeros_like(acc_ref)

    # Linear1 chunk on the MXU: bf16 operands, f32 accumulation.
    h = jnp.dot(x_ref[...], w1_ref[...], preferred_element_type=jnp.float32)
    h = h + b1_ref[...]

    # Swish / SiLU: x * sigmoid(x). exp and the approximate reciprocal both
    # go to the EUP slot (free filler), not VALU divides.
    h = h * pl.reciprocal(1.0 + jnp.exp(-h), approx=True)

    # Linear2 chunk, accumulated in f32 across Dff chunks.
    acc_ref[...] += jnp.dot(h.astype(w2_ref.dtype), w2_ref[...],
                            preferred_element_type=jnp.float32)

    @pl.when(f == pl.num_programs(1) - 1)
    def _finalize():
        y_ref[...] = (acc_ref[...] + b2_ref[...]).astype(y_ref.dtype)


def prepare_fusion_params(w1, b1, w2, b2, *, param_dtype=jnp.bfloat16,
                          ff_chunk=512):
    """One-time prep of PyTorch-layout Linear params (call outside the hot path).

    w1: (dim_ffn, dim_in) with dim_in = a_dim + v_dim, b1: (dim_ffn,)
    w2: (dim_out, dim_ffn),                            b2: (dim_out,)
    Transposes, pads to lane-dense shapes, casts weights to bf16 and picks the
    dim_ffn streaming chunk (multiple of 256 for large ffn).
    """
    dim_ffn, dim_in = w1.shape
    dim_out = w2.shape[0]
    dim_out_pad = _round_up(dim_out, 128)          # lane-dense output stores

    if dim_ffn <= ff_chunk:
        tf = _round_up(dim_ffn, 128)               # single chunk
    else:
        tf = ff_chunk                              # multiple of 256 (v6e/v7x K)
    dim_ffn_pad = _round_up(dim_ffn, tf)

    # Zero-padded dim_ffn columns are harmless: h=0 (zero bias), swish(0)=0,
    # and the matching zero W2 rows contribute nothing.
    w1_t = jnp.pad(jnp.transpose(w1),
                   ((0, 0), (0, dim_ffn_pad - dim_ffn))).astype(param_dtype)
    b1_r = jnp.pad(b1, (0, dim_ffn_pad - dim_ffn)
                   ).reshape(1, dim_ffn_pad).astype(jnp.float32)
    w2_t = jnp.pad(jnp.transpose(w2),
                   ((0, dim_ffn_pad - dim_ffn),
                    (0, dim_out_pad - dim_out))).astype(param_dtype)
    b2_r = jnp.pad(b2, (0, dim_out_pad - dim_out)
                   ).reshape(1, dim_out_pad).astype(jnp.float32)
    return dict(w1_t=w1_t, b1=b1_r, w2_t=w2_t, b2=b2_r,
                dim_in=dim_in, dim_out=dim_out, ff_chunk=tf)


def _pick_row_tile(m, sublane, tm_max=256):
    """Largest tile with >=2 grid steps and <=25% pad waste (dtype-aware)."""
    ladder = [t for t in (256, 128, 64, 32, 16, 8) if sublane <= t <= tm_max]
    if not ladder:
        ladder = [_round_up(tm_max, sublane)]
    best_t, best_score = ladder[-1], None
    for t in ladder:
        m_pad = _round_up(m, t)
        steps = m_pad // t
        waste = (m_pad - m) / m_pad
        score = (steps < 2, waste > 0.25, -t)
        if best_score is None or score < best_score:
            best_t, best_score = t, score
    return best_t, _round_up(m, best_t)


def fusion_module(audio, video, params, *, tm_max=256,
                  compute_dtype=jnp.bfloat16):
    """audio: (B, T, a_dim), video: (B, T, v_dim) -> (B, T, dim_out)."""
    w1_t, b1_r = params["w1_t"], params["b1"]
    w2_t, b2_r = params["w2_t"], params["b2"]
    dim_in, dim_out = params["dim_in"], params["dim_out"]
    tf = params["ff_chunk"]

    B, T, Da = audio.shape
    Dv = video.shape[-1]
    assert Da + Dv == dim_in
    Dff_pad = w1_t.shape[1]
    Dout_pad = w2_t.shape[1]

    M = B * T
    isz = lambda d: jnp.dtype(d).itemsize
    sublane = {1: 32, 2: 16}.get(isz(compute_dtype), 8)
    tm, M_pad = _pick_row_tile(M, sublane, tm_max)

    # Fused "concat": one (M, Da+Dv) operand so Linear1 is a single
    # K = Da+Dv contraction instead of two small-K matmuls.
    x2 = jnp.concatenate(
        [audio.reshape(M, Da), video.reshape(M, Dv)], axis=-1
    ).astype(compute_dtype)
    if M_pad != M:
        x2 = jnp.pad(x2, ((0, M_pad - M), (0, 0)))

    grid = (M_pad // tm, Dff_pad // tf)

    # Size the VMEM request from the real per-step footprint (+headroom),
    # capped well below v7x's 64 MiB physical VMEM.
    blk_bytes = (
        2 * tm * dim_in * isz(compute_dtype)       # x tile (double-buffered)
        + 2 * dim_in * tf * isz(w1_t.dtype)        # W1 chunk
        + 2 * tf * 4                               # b1 chunk
        + 2 * tf * Dout_pad * isz(w2_t.dtype)      # W2 chunk
        + 2 * Dout_pad * 4                         # b2
        + 2 * tm * Dout_pad * isz(audio.dtype)     # y tile
        + tm * Dout_pad * 4                        # f32 accumulator scratch
    )
    vmem_limit = int(min(48 * 1024 * 1024, max(2 * blk_bytes, 16 * 1024 * 1024)))

    cost = pl.CostEstimate(
        flops=2 * M_pad * dim_in * Dff_pad + 2 * M_pad * Dff_pad * Dout_pad,
        transcendentals=M_pad * Dff_pad,
        bytes_accessed=(x2.size * isz(compute_dtype)
                        + w1_t.size * isz(w1_t.dtype) + b1_r.size * 4
                        + w2_t.size * isz(w2_t.dtype) + b2_r.size * 4
                        + M_pad * Dout_pad * isz(audio.dtype)),
    )

    y_pad = pl.pallas_call(
        _fusion_kernel,
        out_shape=jax.ShapeDtypeStruct((M_pad, Dout_pad), audio.dtype),
        grid=grid,
        in_specs=[
            pl.BlockSpec((tm, dim_in), lambda i, f: (i, 0)),     # x (const in f)
            pl.BlockSpec((dim_in, tf), lambda i, f: (0, f)),     # W1 chunk
            pl.BlockSpec((1, tf), lambda i, f: (0, f)),          # b1 chunk
            pl.BlockSpec((tf, Dout_pad), lambda i, f: (f, 0)),   # W2 chunk
            pl.BlockSpec((1, Dout_pad), lambda i, f: (0, 0)),    # b2
        ],
        out_specs=pl.BlockSpec((tm, Dout_pad), lambda i, f: (i, 0)),
        scratch_shapes=[pltpu.VMEM((tm, Dout_pad), jnp.float32)],
        compiler_params=pltpu.CompilerParams(
            dimension_semantics=("parallel", "arbitrary"),
            vmem_limit_bytes=vmem_limit,
        ),
        cost_estimate=cost,
    )(x2, w1_t, b1_r, w2_t, b2_r)

    # TODO(synk): constant-index blocks (b2, x across the Dff axis) could be
    # single-buffered via pipeline_mode=pl.Buffered(1) to shave a little more
    # VMEM on v7x; footprint is already small after Dff streaming + bf16.
    return y_pad[:M, :dim_out].reshape(B, T, dim_out)


def _reference(audio, video, w1, b1, w2, b2):
    x = jnp.concatenate([audio, video], axis=-1)
    h = jnp.einsum("btd,fd->btf", x, w1) + b1
    h = h * jax.nn.sigmoid(h)                      # Swish / SiLU
    y = jnp.einsum("btf,of->bto", h, w2) + b2
    return y


if __name__ == "__main__":
    # Small shapes consistent with FusionModule(a_dim, v_dim, f_dim, ff_ratio).
    B, T = 2, 8
    a_dim, v_dim, f_dim, ff_ratio = 32, 32, 32, 4
    dim_in = a_dim + v_dim          # 64
    dim_ffn = ff_ratio * f_dim      # 128
    dim_out = f_dim                 # 32

    key = jax.random.PRNGKey(0)
    ka, kv, k1, k2, k3, k4 = jax.random.split(key, 6)
    audio = jax.random.normal(ka, (B, T, a_dim), dtype=jnp.float32)
    video = jax.random.normal(kv, (B, T, v_dim), dtype=jnp.float32)
    # PyTorch Linear layout: weight (out, in), bias (out,)
    w1 = jax.random.normal(k1, (dim_ffn, dim_in), dtype=jnp.float32) * 0.1
    b1 = jax.random.normal(k2, (dim_ffn,), dtype=jnp.float32) * 0.1
    w2 = jax.random.normal(k3, (dim_out, dim_ffn), dtype=jnp.float32) * 0.1
    b2 = jax.random.normal(k4, (dim_out,), dtype=jnp.float32) * 0.1

    params = prepare_fusion_params(w1, b1, w2, b2)   # one-time prep (bf16 weights)
    y = fusion_module(audio, video, params)
    y = jax.block_until_ready(y)

    y_ref = _reference(audio, video, w1, b1, w2, b2)
    assert y.shape == (B, T, dim_out)
    # bf16 MXU operands -> tolerances relaxed vs the exact f32 reference.
    max_err = float(jnp.max(jnp.abs(y - y_ref)))
    assert jnp.allclose(y, y_ref, atol=3e-2, rtol=3e-2), max_err

    print("KERNEL_OK")
</pallas_src>

<mosaic_0001>
module attributes {stable_mosaic.version = 11 : i64} {
  func.func @_fusion_kernel(%arg0: i32, %arg1: i32, %arg2: memref<16x64xbf16, #tpu.memory_space<vmem>>, %arg3: memref<64x128xbf16, #tpu.memory_space<vmem>>, %arg4: memref<1x128xf32, #tpu.memory_space<vmem>>, %arg5: memref<128x128xbf16, #tpu.memory_space<vmem>>, %arg6: memref<1x128xf32, #tpu.memory_space<vmem>>, %arg7: memref<16x128xf32, #tpu.memory_space<vmem>>, %arg8: memref<16x128xf32, #tpu.memory_space<vmem>>) attributes {dimension_semantics = [#tpu.dimension_semantics<parallel>, #tpu.dimension_semantics<arbitrary>], iteration_bounds = array<i64: 1, 1>, scalar_prefetch = 0 : i64, scratch_operands = 1 : i64, tpu.core_type = #tpu.core_type<tc>, window_params = [{transform_indices = @transform_0, window_bounds = array<i64: 16, 64>}, {transform_indices = @transform_1, window_bounds = array<i64: 64, 128>}, {transform_indices = @transform_2, window_bounds = array<i64: 1, 128>}, {transform_indices = @transform_3, window_bounds = array<i64: 128, 128>}, {pipeline_mode = #tpu.pipeline_mode<synchronous>, transform_indices = @transform_4, window_bounds = array<i64: 1, 128>}, {transform_indices = @transform_5, window_bounds = array<i64: 16, 128>}]} {
    %c0_i32 = arith.constant 0 : i32
    %0 = arith.cmpi eq, %arg1, %c0_i32 : i32
    %1 = arith.extui %0 : i1 to i32
    %c0_i32_0 = arith.constant 0 : i32
    %2 = arith.cmpi ne, %1, %c0_i32_0 : i32
    scf.if %2 {
      %cst_17 = arith.constant 0.000000e+00 : f32
      %25 = vector.broadcast %cst_17 : f32 to vector<16x128xf32>
      %c0_18 = arith.constant 0 : index
      %c0_19 = arith.constant 0 : index
      %26 = vector.load %arg8[%c0_18, %c0_19] : memref<16x128xf32, #tpu.memory_space<vmem>>, vector<16x128xf32>
      tpu.vector_store %arg8[%c0_18, %c0_19], %25 {strides = array<i32>} : memref<16x128xf32, #tpu.memory_space<vmem>>, vector<16x128xf32>,
    } else {
    }
    %c0 = arith.constant 0 : index
    %c0_1 = arith.constant 0 : index
    %3 = vector.load %arg2[%c0, %c0_1] : memref<16x64xbf16, #tpu.memory_space<vmem>>, vector<16x64xbf16>
    %c0_2 = arith.constant 0 : index
    %c0_3 = arith.constant 0 : index
    %4 = vector.load %arg3[%c0_2, %c0_3] : memref<64x128xbf16, #tpu.memory_space<vmem>>, vector<64x128xbf16>
    %cst = arith.constant dense<0.000000e+00> : vector<16x128xf32>
    %5 = tpu.matmul %3, %4, %cst {dimension_numbers = #tpu.dot_dimension_numbers<[1], [0], [0], [1], [0, 0, 1, 1], [], []>} : vector<16x64xbf16>, vector<64x128xbf16>, vector<16x128xf32> -> vector<16x128xf32>
    %c0_4 = arith.constant 0 : index
    %c0_5 = arith.constant 0 : index
    %6 = vector.load %arg4[%c0_4, %c0_5] : memref<1x128xf32, #tpu.memory_space<vmem>>, vector<1x128xf32>
    %7 = vector.broadcast %6 : vector<1x128xf32> to vector<16x128xf32>
    %8 = arith.addf %5, %7 : vector<16x128xf32>
    %cst_6 = arith.constant 0.000000e+00 : f32
    %9 = vector.broadcast %cst_6 : f32 to vector<16x128xf32>
    %10 = arith.subf %9, %8 : vector<16x128xf32>
    %11 = math.exp %10 : vector<16x128xf32>
    %cst_7 = arith.constant 1.000000e+00 : f32
    %12 = vector.broadcast %cst_7 : f32 to vector<16x128xf32>
    %13 = arith.addf %12, %11 : vector<16x128xf32>
    %14 = tpu.reciprocal %13 {approx = true} : vector<16x128xf32> -> vector<16x128xf32>
    %15 = arith.mulf %8, %14 : vector<16x128xf32>
    %c0_8 = arith.constant 0 : index
    %c0_9 = arith.constant 0 : index
    %16 = vector.load %arg8[%c0_8, %c0_9] : memref<16x128xf32, #tpu.memory_space<vmem>>, vector<16x128xf32>
    %17 = arith.truncf %15 : vector<16x128xf32> to vector<16x128xbf16>
    %c0_10 = arith.constant 0 : index
    %c0_11 = arith.constant 0 : index
    %18 = vector.load %arg5[%c0_10, %c0_11] : memref<128x128xbf16, #tpu.memory_space<vmem>>, vector<128x128xbf16>
    %cst_12 = arith.constant dense<0.000000e+00> : vector<16x128xf32>
    %19 = tpu.matmul %17, %18, %cst_12 {dimension_numbers = #tpu.dot_dimension_numbers<[1], [0], [0], [1], [0, 0, 1, 1], [], []>} : vector<16x128xbf16>, vector<128x128xbf16>, vector<16x128xf32> -> vector<16x128xf32>
    %20 = arith.addf %16, %19 : vector<16x128xf32>
    %c0_13 = arith.constant 0 : index
    %c0_14 = arith.constant 0 : index
    %21 = vector.load %arg8[%c0_13, %c0_14] : memref<16x128xf32, #tpu.memory_space<vmem>>, vector<16x128xf32>
    tpu.vector_store %arg8[%c0_13, %c0_14], %20 {strides = array<i32>} : memref<16x128xf32, #tpu.memory_space<vmem>>, vector<16x128xf32>,
    %c0_i32_15 = arith.constant 0 : i32
    %22 = arith.cmpi eq, %arg1, %c0_i32_15 : i32
    %23 = arith.extui %22 : i1 to i32
    %c0_i32_16 = arith.constant 0 : i32
    %24 = arith.cmpi ne, %23, %c0_i32_16 : i32
    scf.if %24 {
      %c0_17 = arith.constant 0 : index
      %c0_18 = arith.constant 0 : index
      %25 = vector.load %arg8[%c0_17, %c0_18] : memref<16x128xf32, #tpu.memory_space<vmem>>, vector<16x128xf32>
      %c0_19 = arith.constant 0 : index
      %c0_20 = arith.constant 0 : index
      %26 = vector.load %arg6[%c0_19, %c0_20] : memref<1x128xf32, #tpu.memory_space<vmem>>, vector<1x128xf32>
      %27 = vector.broadcast %26 : vector<1x128xf32> to vector<16x128xf32>
      %28 = arith.addf %25, %27 : vector<16x128xf32>
      %c0_21 = arith.constant 0 : index
      %c0_22 = arith.constant 0 : index
      %29 = vector.load %arg7[%c0_21, %c0_22] : memref<16x128xf32, #tpu.memory_space<vmem>>, vector<16x128xf32>
      tpu.vector_store %arg7[%c0_21, %c0_22], %28 {strides = array<i32>} : memref<16x128xf32, #tpu.memory_space<vmem>>, vector<16x128xf32>,
    } else {
    }
    return
  }
  func.func @transform_0(%arg0: i32, %arg1: i32) -> (i32, i32) {
    %c0_i32 = arith.constant 0 : i32
    %c0_i32_0 = arith.constant 0 : i32
    return %arg0, %c0_i32 : i32, i32
  }
  func.func @transform_1(%arg0: i32, %arg1: i32) -> (i32, i32) {
    %c0_i32 = arith.constant 0 : i32
    %c0_i32_0 = arith.constant 0 : i32
    return %c0_i32, %arg1 : i32, i32
  }
  func.func @transform_2(%arg0: i32, %arg1: i32) -> (i32, i32) {
    %c0_i32 = arith.constant 0 : i32
    %c0_i32_0 = arith.constant 0 : i32
    return %c0_i32, %arg1 : i32, i32
  }
  func.func @transform_3(%arg0: i32, %arg1: i32) -> (i32, i32) {
    %c0_i32 = arith.constant 0 : i32
    %c0_i32_0 = arith.constant 0 : i32
    return %arg1, %c0_i32 : i32, i32
  }
  func.func @transform_4(%arg0: i32, %arg1: i32) -> (i32, i32) {
    %c0_i32 = arith.constant 0 : i32
    %c0_i32_0 = arith.constant 0 : i32
    %c0_i32_1 = arith.constant 0 : i32
    return %c0_i32, %c0_i32_0 : i32, i32
  }
  func.func @transform_5(%arg0: i32, %arg1: i32) -> (i32, i32) {
    %c0_i32 = arith.constant 0 : i32
    %c0_i32_0 = arith.constant 0 : i32
    return %arg0, %c0_i32 : i32, i32
  }
}

</mosaic_0001>

<llo_original>
// kernel: tpu_custom_call.1
$region0: #{tpu_custom_call.1}
  #allocation0 [shape = 'u32[]', space=smem, size = 0x4, offset = 0x4, fixed_abs, tag = 'smem constant byte address 0x4 - core index']
  #allocation1 [shape = 'u32[72,128]{1,0:T(1,128)}', space=vmem, size = 0x9000, scoped, tag = 'internal scratch']
  #allocation2 [shape = 'f32[16,128]{1,0:T(8,128)}', space=vmem, size = 0x2000, scoped, tag = 'scratch operand']
  %s0 = inlined_call_operand.hbm [shape: bf16[16,64], index: 0, kind: input, shape index: {}]
  %s1 = inlined_call_operand.hbm [shape: bf16[64,128], index: 1, kind: input, shape index: {}]
  %s2 = inlined_call_operand.vmem [shape: f32[1,128], index: 2, kind: input, shape index: {}]
  %s3 = inlined_call_operand.hbm [shape: bf16[128,128], index: 3, kind: input, shape index: {}]
  %s4 = inlined_call_operand.vmem [shape: f32[1,128], index: 4, kind: input, shape index: {}]
  %s5 = inlined_call_operand.hbm [shape: f32[16,128], index: 5, kind: output, shape index: {}]
  %s6 = sld [smem:[#allocation0]]
  $region50: #{tpu_custom_call.1} parent=0
    _
  %s8 = ssub.s32 1, %s6
  %s9 = scalar_select 0, %s8, %s6
  $region1: #{tpu_custom_call.1} parent=0
    #allocation3 [shape = 'u8[4096]{0}', space=vmem, size = 0x1000, scoped, tag = 'input window, operand 0, single buffered']
    #allocation4 [shape = 's32[1]{0}', space=sflag, size = 0x4, scoped, tag = 'scoped memory for tpu_custom_call.1']
    #allocation5 [shape = 's32[1]{0}', space=sflag, size = 0x4, scoped, tag = 'scoped memory for tpu_custom_call.1']
    #allocation6 [shape = 'u8[16384]{0}', space=vmem, size = 0x4000, scoped, tag = 'input window, operand 1, single buffered']
    #allocation7 [shape = 's32[1]{0}', space=sflag, size = 0x4, scoped, tag = 'scoped memory for tpu_custom_call.1']
    #allocation8 [shape = 'u8[32768]{0}', space=vmem, size = 0x8000, scoped, tag = 'input window, operand 3, single buffered']
    #allocation9 [shape = 'u8[8192]{0}', space=vmem, size = 0x2000, scoped, tag = 'output window, operand 0, single buffered']
    %10 = vsyncpa [#allocation4], 0
    %11 = vsyncpa [#allocation7], 0
    %12 = vsyncpa [#allocation5], 0
    // Predicated region
    $region2: #{tpu_custom_call.1} parent=1 // pred_check
      _
    $region3: #{tpu_custom_call.1} parent=1 // pred_check_branch
      %14 = sbr.rel (0) target = $region5
    $region4: #{tpu_custom_call.1} parent=1 // pred_region
      %16 = vsyncadd [#allocation4], 0
      %s17 = sshll.u32 %s0, 4
      %s18 = int_to_ptr.hbm [resolvable:$true] %s17
      %s19 = sshll.u32 [#allocation3], 4
      %s20 = int_to_ptr.vmem [resolvable:$true] %s19
      %25 = dma.hbm_to_vmem [thread:$0]  %s18, 128, %s20, [#allocation4], 64, 64, 4
    $region5: #{tpu_custom_call.1} parent=1 // pred_fallthru
      _
    // Predicated region
    $region6: #{tpu_custom_call.1} parent=1 // pred_check
      _
    $region7: #{tpu_custom_call.1} parent=1 // pred_check_branch
      %27 = sbr.rel (0) target = $region9
    $region8: #{tpu_custom_call.1} parent=1 // pred_region
      %29 = vsyncadd [#allocation7], 0
      %s30 = sshll.u32 %s1, 4
      %s31 = int_to_ptr.hbm [resolvable:$true] %s30
      %s32 = sshll.u32 [#allocation6], 4
      %s33 = int_to_ptr.vmem [resolvable:$true] %s32
      %38 = dma.hbm_to_vmem [thread:$0]  %s31, 512, %s33, [#allocation7], 64, 64, 4
    $region9: #{tpu_custom_call.1} parent=1 // pred_fallthru
      _
    // Predicated region
    $region10: #{tpu_custom_call.1} parent=1 // pred_check
      _
    $region11: #{tpu_custom_call.1} parent=1 // pred_check_branch
      %40 = sbr.rel (0) target = $region13
    $region12: #{tpu_custom_call.1} parent=1 // pred_region
      _
    $region13: #{tpu_custom_call.1} parent=1 // pred_fallthru
      _
    // Predicated region
    $region14: #{tpu_custom_call.1} parent=1 // pred_check
      _
    $region15: #{tpu_custom_call.1} parent=1 // pred_check_branch
      %42 = sbr.rel (0) target = $region17
    $region16: #{tpu_custom_call.1} parent=1 // pred_region
      %44 = vsyncadd [#allocation7], 0
      %s45 = sshll.u32 %s3, 4
      %s46 = int_to_ptr.hbm [resolvable:$true] %s45
      %s47 = sshll.u32 [#allocation8], 4
      %s48 = int_to_ptr.vmem [resolvable:$true] %s47
      %53 = dma.hbm_to_vmem [thread:$0]  %s46, 1024, %s48, [#allocation7], 64, 64, 4
    $region17: #{tpu_custom_call.1} parent=1 // pred_fallthru
      _
    // Predicated region
    $region18: #{tpu_custom_call.1} parent=1 // pred_check
      _
    $region19: #{tpu_custom_call.1} parent=1 // pred_check_branch
      %55 = sbr.rel (0) target = $region21
    $region20: #{tpu_custom_call.1} parent=1 // pred_region
      _
    $region21: #{tpu_custom_call.1} parent=1 // pred_fallthru
      _
    // Predicated region
    $region22: #{tpu_custom_call.1} parent=1 // pred_check
      _
    $region23: #{tpu_custom_call.1} parent=1 // pred_check_branch
      %57 = sbr.rel (0) target = $region25
    $region24: #{tpu_custom_call.1} parent=1 // pred_region
      %59 = dma.done [#allocation4], 128
    $region25: #{tpu_custom_call.1} parent=1 // pred_fallthru
      _
    // Predicated region
    $region26: #{tpu_custom_call.1} parent=1 // pred_check
      _
    $region27: #{tpu_custom_call.1} parent=1 // pred_check_branch
      %61 = sbr.rel (0) target = $region29
    $region28: #{tpu_custom_call.1} parent=1 // pred_region
      %63 = dma.done [#allocation7], 512
    $region29: #{tpu_custom_call.1} parent=1 // pred_fallthru
      _
    // Predicated region
    $region30: #{tpu_custom_call.1} parent=1 // pred_check
      _
    $region31: #{tpu_custom_call.1} parent=1 // pred_check_branch
      %65 = sbr.rel (0) target = $region33
    $region32: #{tpu_custom_call.1} parent=1 // pred_region
      %67 = dma.done [#allocation7], 1024
    $region33: #{tpu_custom_call.1} parent=1 // pred_fallthru
      _
    %p69 = scmp.eq.s32.totalorder 0, 0
    // Predicated region
    $region34: #{tpu_custom_call.1} parent=1 // pred_check
      %p70 = pneg %p69
    $region35: #{tpu_custom_call.1} parent=1 // pred_check_branch
      %72 = sbr.rel (%p70) target = $region37
    $region36: #{tpu_custom_call.1} parent=1 // pred_region
      %73 = vst [vmem:[#allocation2] sm:$0xff] 0.0
      %74 = vst [vmem:[#allocation2 + $0x8] sm:$0xff] 0.0
    $region37: #{tpu_custom_call.1} parent=1 // pred_fallthru
      _
    %v75 = vld [vmem:[#allocation3] sm:$0xf]
    %v76 = vld [vmem:[#allocation3 + $0x4] sm:$0xf]
    %v77 = vld [vmem:[#allocation6] sm:$0xf]
    %v78 = vld [vmem:[#allocation6 + $0x4] sm:$0xf]
    %v79 = vld [vmem:[#allocation6 + $0x8] sm:$0xf]
    %v80 = vld [vmem:[#allocation6 + $0xc] sm:$0xf]
    %v81 = vld [vmem:[#allocation6 + $0x10] sm:$0xf]
    %v82 = vld [vmem:[#allocation6 + $0x14] sm:$0xf]
    %v83 = vld [vmem:[#allocation6 + $0x18] sm:$0xf]
    %v84 = vld [vmem:[#allocation6 + $0x1c] sm:$0xf]
    %v85 = vld [vmem:[%s2] sm:$0x1]
    %v87 = vperm.slane %v85, 0
    %v91 = vunpack.c.l.b16 %v75
    %v92 = vunpack.c.l.b16 %v76
    %v93 = vpack.c.b16 %v92, %v91
    %v102 = vunpack.c.l.b16 %v77
    %v103 = vunpack.c.l.b16 %v78
    %v104 = vunpack.c.l.b16 %v79
    %v105 = vunpack.c.l.b16 %v80
    %v106 = vunpack.c.l.b16 %v81
    %v107 = vunpack.c.l.b16 %v82
    %v108 = vunpack.c.l.b16 %v83
    %v109 = vunpack.c.l.b16 %v84
    %v110 = vpack.c.b16 %v103, %v102
    %v111 = vpack.c.b16 %v105, %v104
    %v112 = vpack.c.b16 %v107, %v106
    %v113 = vpack.c.b16 %v109, %v108
    %vm118 = vcmask 523264
    %v120 = vsel %vm118, %v93, 0
    %122 = vmatpush.bf16.msra.mxu0 0
    %123 = vmatpush.bf16.msra.mxu0 0
    %124 = vmatpush.bf16.msra.mxu0 0
    %125 = vmatpush.bf16.msra.mxu0 0
    %126 = vmatpush.bf16.msra.mxu0 %v113
    %127 = vmatpush.bf16.msra.mxu0 %v112
    %128 = vmatpush.bf16.msra.mxu0 %v111
    %129 = vmatpush.bf16.msra.mxu0 %v110
    %130 = vmatmul.bf16.gmra.mxu0 %v120
    %v131 = vpop.f32.mrf.mxu0
    %v132 = vadd.f32 %v87, %v131
    %v133 = vpop.f32.mrf.mxu0
    %v134 = vadd.f32 %v87, %v133
    %135 = vdwg.mxu0
    %v136 = vsub.f32 0.0, %v132
    %v137 = vsub.f32 0.0, %v134
    %v138 = vmul.f32 %v136, 1.442695
    %v139 = vpow.pop %v138
    %v140 = vmul.f32 %v137, 1.442695
    %v141 = vpow.pop %v140
    %v142 = vadd.f32 %v139, 1.0
    %v143 = vadd.f32 %v141, 1.0
    %v144 = vrcp.pop %v142
    %v145 = vrcp.pop %v143
    %v146 = vmul.f32 %v132, %v144
    %v147 = vmul.f32 %v134, %v145
    %v148 = vld [vmem:[#allocation2] sm:$0xff]
    %v149 = vld [vmem:[#allocation2 + $0x8] sm:$0xff]
    %v150 = vpack.c.bf16 %v147, %v146
    %v151 = vld [vmem:[#allocation8] sm:$0xf]
    %v152 = vld [vmem:[#allocation8 + $0x4] sm:$0xf]
    %v153 = vld [vmem:[#allocation8 + $0x8] sm:$0xf]
    %v154 = vld [vmem:[#allocation8 + $0xc] sm:$0xf]
    %v155 = vld [vmem:[#allocation8 + $0x10] sm:$0xf]
    %v156 = vld [vmem:[#allocation8 + $0x14] sm:$0xf]
    %v157 = vld [vmem:[#allocation8 + $0x18] sm:$0xf]
    %v158 = vld [vmem:[#allocation8 + $0x1c] sm:$0xf]
    %v159 = vld [vmem:[#allocation8 + $0x20] sm:$0xf]
    %v160 = vld [vmem:[#allocation8 + $0x24] sm:$0xf]
    %v161 = vld [vmem:[#allocation8 + $0x28] sm:$0xf]
    %v162 = vld [vmem:[#allocation8 + $0x2c] sm:$0xf]
    %v163 = vld [vmem:[#allocation8 + $0x30] sm:$0xf]
    %v164 = vld [vmem:[#allocation8 + $0x34] sm:$0xf]
    %v165 = vld [vmem:[#allocation8 + $0x38] sm:$0xf]
    %v166 = vld [vmem:[#allocation8 + $0x3c] sm:$0xf]
    %v183 = vunpack.c.l.b16 %v151
    %v184 = vunpack.c.l.b16 %v152
    %v185 = vunpack.c.l.b16 %v153
    %v186 = vunpack.c.l.b16 %v154
    %v187 = vunpack.c.l.b16 %v155
    %v188 = vunpack.c.l.b16 %v156
    %v189 = vunpack.c.l.b16 %v157
    %v190 = vunpack.c.l.b16 %v158
    %v191 = vunpack.c.l.b16 %v159
    %v192 = vunpack.c.l.b16 %v160
    %v193 = vunpack.c.l.b16 %v161
    %v194 = vunpack.c.l.b16 %v162
    %v195 = vunpack.c.l.b16 %v163
    %v196 = vunpack.c.l.b16 %v164
    %v197 = vunpack.c.l.b16 %v165
    %v198 = vunpack.c.l.b16 %v166
    %v199 = vpack.c.b16 %v184, %v183
    %v200 = vpack.c.b16 %v186, %v185
    %v201 = vpack.c.b16 %v188, %v187
    %v202 = vpack.c.b16 %v190, %v189
    %v203 = vpack.c.b16 %v192, %v191
    %v204 = vpack.c.b16 %v194, %v193
    %v205 = vpack.c.b16 %v196, %v195
    %v206 = vpack.c.b16 %v198, %v197
    %215 = vmatpush.bf16.msra.mxu0 %v206
    %216 = vmatpush.bf16.msra.mxu0 %v205
    %217 = vmatpush.bf16.msra.mxu0 %v204
    %218 = vmatpush.bf16.msra.mxu0 %v203
    %219 = vmatpush.bf16.msra.mxu0 %v202
    %220 = vmatpush.bf16.msra.mxu0 %v201
    %221 = vmatpush.bf16.msra.mxu0 %v200
    %222 = vmatpush.bf16.msra.mxu0 %v199
    %223 = vmatmul.bf16.gmra.mxu0 %v150
    %v224 = vpop.f32.mrf.mxu0
    %v225 = vadd.f32 0.0, %v224
    %v226 = vpop.f32.mrf.mxu0
    %v227 = vadd.f32 0.0, %v226
    %228 = vdwg.mxu0
    %v229 = vadd.f32 %v148, %v225
    %v230 = vadd.f32 %v149, %v227
    %231 = vst [vmem:[#allocation2] sm:$0xff] %v229
    %232 = vst [vmem:[#allocation2 + $0x8] sm:$0xff] %v230
    // Predicated region
    $region38: #{tpu_custom_call.1} parent=1 // pred_check
      %p233 = pneg %p69
    $region39: #{tpu_custom_call.1} parent=1 // pred_check_branch
      %235 = sbr.rel (%p233) target = $region41
    $region40: #{tpu_custom_call.1} parent=1 // pred_region
      %v236 = vld [vmem:[#allocation2] sm:$0xff]
      %v237 = vld [vmem:[#allocation2 + $0x8] sm:$0xff]
      %v238 = vld [vmem:[%s4] sm:$0x1]
      %v240 = vperm.slane %v238, 0
      %v242 = vadd.f32 %v236, %v240
      %v243 = vadd.f32 %v237, %v240
      %244 = vst [vmem:[#allocation9] sm:$0xff] %v242
      %245 = vst [vmem:[#allocation9 + $0x8] sm:$0xff] %v243
    $region41: #{tpu_custom_call.1} parent=1 // pred_fallthru
      _
    // Predicated region
    $region42: #{tpu_custom_call.1} parent=1 // pred_check
      _
    $region43: #{tpu_custom_call.1} parent=1 // pred_check_branch
      %247 = sbr.rel (0) target = $region45
    $region44: #{tpu_custom_call.1} parent=1 // pred_region
      %249 = vsyncadd [#allocation5], 0
      %s250 = sshll.u32 [#allocation9], 4
      %s251 = int_to_ptr.vmem [resolvable:$true] %s250
      %s252 = sshll.u32 %s5, 4
      %s253 = int_to_ptr.hbm [resolvable:$true] %s252
      %258 = dma.vmem_to_hbm [thread:$0]  %s251, 256, %s253, [#allocation5], 128, 128, 8
    $region45: #{tpu_custom_call.1} parent=1 // pred_fallthru
      _
    // Predicated region
    $region46: #{tpu_custom_call.1} parent=1 // pred_check
      _
    $region47: #{tpu_custom_call.1} parent=1 // pred_check_branch
      %260 = sbr.rel (0) target = $region49
    $region48: #{tpu_custom_call.1} parent=1 // pred_region
      %262 = dma.done [#allocation5], 256
    $region49: #{tpu_custom_call.1} parent=1 // pred_fallthru
      _
    %263 = vsyncpa [#allocation4], 1
    %264 = vsyncpa [#allocation7], 1
    %265 = vsyncpa [#allocation5], 1

</llo_original>
